<compile_context>
chip_gen: v6e
topology: v6e:2x2x1
jax: 0.10.0
libtpu: 0.0.40
codegen_flags: <defaults>
</compile_context>

<pallas_src>
import math

import jax
import jax.numpy as jnp
from jax.experimental import pallas as pl
from jax.experimental.pallas import tpu as pltpu


def _recip(d):
    # EUP approx reciprocal (free slot) + one Newton step -> ~1e-7 relative error.
    r = pl.reciprocal(d, approx=True)
    return r * (2.0 - d * r)


def _make_kernel(Bt, S, D, O, pack_k):
    def kernel(x_ref, wq_ref, bq_ref, wk_ref, bk_ref, wv_ref, bv_ref,
               qc_ref, kc_ref, vc_ref, wfc_ref, bfc_ref, o_ref):
        f32 = jnp.float32
        x = x_ref[...]                                           # (Bt*S, D)

        # --- QKV projection: three MXU passes, results land at lane offset 0 ----
        # (w_q / b_q are pre-scaled by 1/sqrt(D) in the wrapper.)
        q = jnp.dot(x, wq_ref[...], preferred_element_type=f32) + bq_ref[...]
        k = jnp.dot(x, wk_ref[...], preferred_element_type=f32) + bk_ref[...]
        v = jnp.dot(x, wv_ref[...], preferred_element_type=f32) + bv_ref[...]
        q3 = q.reshape(Bt, S, D)
        k3 = k.reshape(Bt, S, D)
        v3 = v.reshape(Bt, S, D)

        qc = qc_ref[...]                                         # (1, D), pre-scaled
        kc = kc_ref[...]
        vc = vc_ref[...]

        # --- scores (cls row/column kept separate: no N=S+1 padding, no concat) --
        s_xx = jnp.einsum("bid,bjd->bij", q3, k3,
                          preferred_element_type=f32)            # (Bt, S, S)
        s_cx = jnp.sum(k3 * qc.reshape(1, 1, D), axis=-1)        # (Bt, S) cls-q vs x-keys
        s_xc = jnp.sum(q3 * kc.reshape(1, 1, D), axis=-1)        # (Bt, S) x-q vs cls-key
        s_cc = jnp.sum(qc * kc, axis=-1, keepdims=True)          # (1, 1)  cls-q vs cls-key

        # torch Softmax(dim=1) == per-key-column softmax over all queries.
        # Only the cls-query row of (att @ v) is needed.
        # x-key columns:
        m_x = jnp.maximum(jnp.max(s_xx, axis=1), s_cx)                    # (Bt, S)
        e_sum = jnp.sum(jnp.exp(s_xx - m_x[:, None, :]), axis=1)          # (Bt, S)
        e_cx = jnp.exp(s_cx - m_x)                                        # (Bt, S)
        w_x = e_cx * _recip(e_sum + e_cx)                                 # (Bt, S)
        # cls-key column:
        m_c = jnp.maximum(jnp.max(s_xc, axis=1, keepdims=True), s_cc)     # (Bt, 1)
        e_csum = jnp.sum(jnp.exp(s_xc - m_c), axis=1, keepdims=True)      # (Bt, 1)
        e_cc = jnp.exp(s_cc - m_c)                                        # (Bt, 1)
        w_c = e_cc * _recip(e_csum + e_cc)                                # (Bt, 1)

        out0 = jnp.sum(w_x[:, :, None] * v3, axis=1) + w_c * vc           # (Bt, D)

        res = jnp.dot(out0, wfc_ref[...],
                      preferred_element_type=f32) + bfc_ref[...]          # (Bt, O)

        if pack_k > 1:
            # lane-dense store: k*O is a multiple of 128 lanes
            o_ref[...] = res.reshape(Bt // pack_k, pack_k * O)
        else:
            o_ref[...] = res

    return kernel


def _pick_batch_tile(B, S):
    """VMEM-budgeted batch tile: multiple of 8, >= 2 grid steps when possible."""
    LANES = 128
    # Conservative per-batch-element f32 footprint (last dim lane-padded to 128):
    # double-buffered x block + q/k/v + score/exp temps + slack for compiler copies.
    per_elem = 4 * S * LANES * (2 + 3 + 2 + 4)
    budget = 24 << 20                       # working-set target, safe on v5e/v6e/v7x
    cap = max(8, min(512, budget // per_elem))
    cap = min(cap, 256)                     # also bounds per-step batched-matmul unroll
    best = 0
    bt = 8
    while bt <= min(cap, B // 2):           # keep >= 2 grid steps (v7x dual-TC, pipelining)
        if B % bt == 0:
            best = bt
        bt += 8
    return best if best else B              # tiny/odd batch: single full-extent step


def transformer_attention_cls(x, params):
    """x: (B, S, D) float32.  Returns (B, output_dim) float32."""
    B, S, D = x.shape
    O = params["w_fc"].shape[1]
    hp = jax.lax.Precision.HIGHEST
    scale = 1.0 / float(D) ** 0.5

    # fold 1/sqrt(D) into the query projection (one-time tiny transform)
    wq = params["w_q"] * scale
    bq = params["b_q"] * scale
    wk, bk = params["w_k"], params["b_k"]
    wv, bv = params["w_v"], params["b_v"]
    wfc, bfc = params["w_fc"], params["b_fc"]
    cls_w = params["cls_w"]                                  # (1, D)

    # grid-invariant classifier-token projections, hoisted out of the kernel
    qc = jnp.dot(cls_w, wq, precision=hp) + bq               # (1, D), pre-scaled
    kc = jnp.dot(cls_w, wk, precision=hp) + bk
    vc = jnp.dot(cls_w, wv, precision=hp) + bv

    Bt = _pick_batch_tile(B, S)
    grid = (B // Bt,)

    # lane-dense output packing: (Bt, O) -> (Bt/k, k*O) with k*O a multiple of 128
    pack_k = 128 // math.gcd(O, 128)
    packed = (pack_k > 1 and Bt % pack_k == 0
              and ((Bt // pack_k) % 8 == 0 or Bt == B))
    if not packed:
        pack_k = 1

    x2 = x.reshape(B * S, D)                                 # contiguous, free reshape
    kernel = _make_kernel(Bt, S, D, O, pack_k)

    if pack_k > 1:
        out_shape = jax.ShapeDtypeStruct((B // pack_k, pack_k * O), jnp.float32)
        out_spec = pl.BlockSpec((Bt // pack_k, pack_k * O), lambda b: (b, 0))
    else:
        out_shape = jax.ShapeDtypeStruct((B, O), jnp.float32)
        out_spec = pl.BlockSpec((Bt, O), lambda b: (b, 0))

    const2 = lambda b: (0, 0)

    out = pl.pallas_call(
        kernel,
        out_shape=out_shape,
        grid_spec=pltpu.PrefetchScalarGridSpec(
            num_scalar_prefetch=0,
            grid=grid,
            in_specs=[
                pl.BlockSpec((Bt * S, D), lambda b: (b, 0)),   # x rows (batch tile)
                pl.BlockSpec((D, D), const2),                  # Wq (pre-scaled)
                pl.BlockSpec((1, D), const2),                  # bq (pre-scaled)
                pl.BlockSpec((D, D), const2),                  # Wk
                pl.BlockSpec((1, D), const2),                  # bk
                pl.BlockSpec((D, D), const2),                  # Wv
                pl.BlockSpec((1, D), const2),                  # bv
                pl.BlockSpec((1, D), const2),                  # q_c (cls projection)
                pl.BlockSpec((1, D), const2),                  # k_c
                pl.BlockSpec((1, D), const2),                  # v_c
                pl.BlockSpec((D, O), const2),                  # Wfc
                pl.BlockSpec((1, O), const2),                  # bfc
            ],
            out_specs=out_spec,
        ),
        compiler_params=pltpu.CompilerParams(
            dimension_semantics=("parallel",),
            vmem_limit_bytes=48 * 1024 * 1024,
        ),
    )(x2, wq, bq, wk, bk, wv, bv, qc, kc, vc, wfc, bfc)

    if pack_k > 1:
        out = out.reshape(B, O)
    return out


def _reference(x, params):
    """Pure-JAX reference mirroring the PyTorch forward exactly (HIGHEST precision)."""
    hp = jax.lax.Precision.HIGHEST
    B, S, D = x.shape
    cls_tok = jnp.ones((B, 1, D), jnp.float32) * params["cls_w"]     # (B,1,D)
    xc = jnp.concatenate([cls_tok, x], axis=1)                        # (B, S+1, D)
    q = jnp.dot(xc, params["w_q"], precision=hp) + params["b_q"]
    k = jnp.dot(xc, params["w_k"], precision=hp) + params["b_k"]
    v = jnp.dot(xc, params["w_v"], precision=hp) + params["b_v"]
    att = jnp.einsum("bnd,bmd->bnm", q, k, precision=hp) / jnp.sqrt(jnp.float32(D))
    att = jax.nn.softmax(att, axis=1)                 # dim=1, as in the module
    out = jnp.einsum("bnm,bmd->bnd", att, v, precision=hp)
    return jnp.dot(out[:, 0, :], params["w_fc"], precision=hp) + params["b_fc"]


def init_params(key, input_dim, output_dim):
    """Torch-style init; weights stored kernel-ready as (in, out), biases (1, out)."""
    ks = jax.random.split(key, 9)
    s = 1.0 / float(input_dim) ** 0.5

    def lin(kw, kb, din, dout):
        w = jax.random.uniform(kw, (dout, din), jnp.float32, -s, s)   # torch (out,in)
        b = jax.random.uniform(kb, (dout,), jnp.float32, -s, s)
        return w.T, b[None, :]

    w_q, b_q = lin(ks[0], ks[1], input_dim, input_dim)
    w_k, b_k = lin(ks[2], ks[3], input_dim, input_dim)
    w_v, b_v = lin(ks[4], ks[5], input_dim, input_dim)
    w_fc, b_fc = lin(ks[6], ks[7], input_dim, output_dim)
    cls_w = jax.random.uniform(ks[8], (1, input_dim), jnp.float32, -s, s)
    return dict(cls_w=cls_w, w_q=w_q, b_q=b_q, w_k=w_k, b_k=b_k,
                w_v=w_v, b_v=b_v, w_fc=w_fc, b_fc=b_fc)


if __name__ == "__main__":
    key = jax.random.PRNGKey(0)
    # (B, S, D, O): small case (full-extent blocks) + a tiled case that exercises
    # the multi-step grid and the lane-dense packed output path (Bt=64, pack_k=8).
    for (B, S, D, O) in [(2, 8, 32, 16), (128, 8, 32, 16)]:
        kx, kp, key = jax.random.split(key, 3)
        x = jax.random.normal(kx, (B, S, D), jnp.float32)
        params = init_params(kp, D, O)      # middle_dim is unused by the torch forward
        out = jax.block_until_ready(transformer_attention_cls(x, params))
        ref = _reference(x, params)
        assert out.shape == (B, O)
        # 1e-3 tolerance leaves margin for MXU f32 pass / reduction-order differences;
        # structural bugs (wrong softmax axis, missing scale) produce >1e-1 errors.
        assert jnp.allclose(out, ref, atol=1e-3, rtol=1e-3), (
            f"mismatch at {(B, S, D, O)}: max abs err "
            f"{float(jnp.max(jnp.abs(out - ref)))}")
    print("KERNEL_OK")
</pallas_src>

<mosaic_0001>
module attributes {stable_mosaic.version = 11 : i64} {
  func.func @kernel(%arg0: i32, %arg1: memref<16x32xf32, #tpu.memory_space<vmem>>, %arg2: memref<32x32xf32, #tpu.memory_space<vmem>>, %arg3: memref<1x32xf32, #tpu.memory_space<vmem>>, %arg4: memref<32x32xf32, #tpu.memory_space<vmem>>, %arg5: memref<1x32xf32, #tpu.memory_space<vmem>>, %arg6: memref<32x32xf32, #tpu.memory_space<vmem>>, %arg7: memref<1x32xf32, #tpu.memory_space<vmem>>, %arg8: memref<1x32xf32, #tpu.memory_space<vmem>>, %arg9: memref<1x32xf32, #tpu.memory_space<vmem>>, %arg10: memref<1x32xf32, #tpu.memory_space<vmem>>, %arg11: memref<32x16xf32, #tpu.memory_space<vmem>>, %arg12: memref<1x16xf32, #tpu.memory_space<vmem>>, %arg13: memref<2x16xf32, #tpu.memory_space<vmem>>) attributes {dimension_semantics = [#tpu.dimension_semantics<parallel>], iteration_bounds = array<i64: 1>, scalar_prefetch = 0 : i64, scratch_operands = 0 : i64, tpu.core_type = #tpu.core_type<tc>, window_params = [{transform_indices = @transform_0, window_bounds = array<i64: 16, 32>}, {pipeline_mode = #tpu.pipeline_mode<synchronous>, transform_indices = @transform_1, window_bounds = array<i64: 32, 32>}, {pipeline_mode = #tpu.pipeline_mode<synchronous>, transform_indices = @transform_2, window_bounds = array<i64: 1, 32>}, {pipeline_mode = #tpu.pipeline_mode<synchronous>, transform_indices = @transform_3, window_bounds = array<i64: 32, 32>}, {pipeline_mode = #tpu.pipeline_mode<synchronous>, transform_indices = @transform_4, window_bounds = array<i64: 1, 32>}, {pipeline_mode = #tpu.pipeline_mode<synchronous>, transform_indices = @transform_5, window_bounds = array<i64: 32, 32>}, {pipeline_mode = #tpu.pipeline_mode<synchronous>, transform_indices = @transform_6, window_bounds = array<i64: 1, 32>}, {pipeline_mode = #tpu.pipeline_mode<synchronous>, transform_indices = @transform_7, window_bounds = array<i64: 1, 32>}, {pipeline_mode = #tpu.pipeline_mode<synchronous>, transform_indices = @transform_8, window_bounds = array<i64: 1, 32>}, {pipeline_mode = #tpu.pipeline_mode<synchronous>, transform_indices = @transform_9, window_bounds = array<i64: 1, 32>}, {pipeline_mode = #tpu.pipeline_mode<synchronous>, transform_indices = @transform_10, window_bounds = array<i64: 32, 16>}, {pipeline_mode = #tpu.pipeline_mode<synchronous>, transform_indices = @transform_11, window_bounds = array<i64: 1, 16>}, {transform_indices = @transform_12, window_bounds = array<i64: 2, 16>}]} {
    %c0 = arith.constant 0 : index
    %c0_0 = arith.constant 0 : index
    %0 = vector.load %arg1[%c0, %c0_0] : memref<16x32xf32, #tpu.memory_space<vmem>>, vector<16x32xf32>
    %c0_1 = arith.constant 0 : index
    %c0_2 = arith.constant 0 : index
    %1 = vector.load %arg2[%c0_1, %c0_2] : memref<32x32xf32, #tpu.memory_space<vmem>>, vector<32x32xf32>
    %cst = arith.constant dense<0.000000e+00> : vector<16x32xf32>
    %2 = tpu.matmul %0, %1, %cst {dimension_numbers = #tpu.dot_dimension_numbers<[1], [0], [0], [1], [0, 0, 1, 1], [], []>} : vector<16x32xf32>, vector<32x32xf32>, vector<16x32xf32> -> vector<16x32xf32>
    %c0_3 = arith.constant 0 : index
    %c0_4 = arith.constant 0 : index
    %3 = vector.load %arg3[%c0_3, %c0_4] : memref<1x32xf32, #tpu.memory_space<vmem>>, vector<1x32xf32>
    %4 = vector.broadcast %3 : vector<1x32xf32> to vector<16x32xf32>
    %5 = arith.addf %2, %4 : vector<16x32xf32>
    %c0_5 = arith.constant 0 : index
    %c0_6 = arith.constant 0 : index
    %6 = vector.load %arg4[%c0_5, %c0_6] : memref<32x32xf32, #tpu.memory_space<vmem>>, vector<32x32xf32>
    %cst_7 = arith.constant dense<0.000000e+00> : vector<16x32xf32>
    %7 = tpu.matmul %0, %6, %cst_7 {dimension_numbers = #tpu.dot_dimension_numbers<[1], [0], [0], [1], [0, 0, 1, 1], [], []>} : vector<16x32xf32>, vector<32x32xf32>, vector<16x32xf32> -> vector<16x32xf32>
    %c0_8 = arith.constant 0 : index
    %c0_9 = arith.constant 0 : index
    %8 = vector.load %arg5[%c0_8, %c0_9] : memref<1x32xf32, #tpu.memory_space<vmem>>, vector<1x32xf32>
    %9 = vector.broadcast %8 : vector<1x32xf32> to vector<16x32xf32>
    %10 = arith.addf %7, %9 : vector<16x32xf32>
    %c0_10 = arith.constant 0 : index
    %c0_11 = arith.constant 0 : index
    %11 = vector.load %arg6[%c0_10, %c0_11] : memref<32x32xf32, #tpu.memory_space<vmem>>, vector<32x32xf32>
    %cst_12 = arith.constant dense<0.000000e+00> : vector<16x32xf32>
    %12 = tpu.matmul %0, %11, %cst_12 {dimension_numbers = #tpu.dot_dimension_numbers<[1], [0], [0], [1], [0, 0, 1, 1], [], []>} : vector<16x32xf32>, vector<32x32xf32>, vector<16x32xf32> -> vector<16x32xf32>
    %c0_13 = arith.constant 0 : index
    %c0_14 = arith.constant 0 : index
    %13 = vector.load %arg7[%c0_13, %c0_14] : memref<1x32xf32, #tpu.memory_space<vmem>>, vector<1x32xf32>
    %14 = vector.broadcast %13 : vector<1x32xf32> to vector<16x32xf32>
    %15 = arith.addf %12, %14 : vector<16x32xf32>
    %16 = vector.shape_cast %5 : vector<16x32xf32> to vector<2x8x32xf32>
    %17 = vector.shape_cast %10 : vector<16x32xf32> to vector<2x8x32xf32>
    %18 = vector.shape_cast %15 : vector<16x32xf32> to vector<2x8x32xf32>
    %c0_15 = arith.constant 0 : index
    %c0_16 = arith.constant 0 : index
    %19 = vector.load %arg8[%c0_15, %c0_16] : memref<1x32xf32, #tpu.memory_space<vmem>>, vector<1x32xf32>
    %c0_17 = arith.constant 0 : index
    %c0_18 = arith.constant 0 : index
    %20 = vector.load %arg9[%c0_17, %c0_18] : memref<1x32xf32, #tpu.memory_space<vmem>>, vector<1x32xf32>
    %c0_19 = arith.constant 0 : index
    %c0_20 = arith.constant 0 : index
    %21 = vector.load %arg10[%c0_19, %c0_20] : memref<1x32xf32, #tpu.memory_space<vmem>>, vector<1x32xf32>
    "tpu.trace_start"() <{level = 10 : i32, message = "bid,bjd->bij"}> : () -> ()
    %cst_21 = arith.constant dense<0.000000e+00> : vector<2x8x8xf32>
    %22 = tpu.matmul %16, %17, %cst_21 {dimension_numbers = #tpu.dot_dimension_numbers<[2], [2], [1], [1], [0, 0, 0, 1, 1, 1], [0], [0]>} : vector<2x8x32xf32>, vector<2x8x32xf32>, vector<2x8x8xf32> -> vector<2x8x8xf32>
    "tpu.trace_stop"() : () -> ()
    %23 = vector.shape_cast %19 : vector<1x32xf32> to vector<1x1x32xf32>
    %24 = vector.broadcast %23 : vector<1x1x32xf32> to vector<2x8x32xf32>
    %25 = arith.mulf %17, %24 : vector<2x8x32xf32>
    %cst_22 = arith.constant dense<0.000000e+00> : vector<2x8xf32>
    %26 = vector.multi_reduction <add>, %25, %cst_22 [2] : vector<2x8x32xf32> to vector<2x8xf32>
    %27 = vector.shape_cast %20 : vector<1x32xf32> to vector<1x1x32xf32>
    %28 = vector.broadcast %27 : vector<1x1x32xf32> to vector<2x8x32xf32>
    %29 = arith.mulf %16, %28 : vector<2x8x32xf32>
    %cst_23 = arith.constant dense<0.000000e+00> : vector<2x8xf32>
    %30 = vector.multi_reduction <add>, %29, %cst_23 [2] : vector<2x8x32xf32> to vector<2x8xf32>
    %31 = arith.mulf %19, %20 : vector<1x32xf32>
    %cst_24 = arith.constant dense<0.000000e+00> : vector<1xf32>
    %32 = vector.multi_reduction <add>, %31, %cst_24 [1] : vector<1x32xf32> to vector<1xf32>
    %33 = vector.shape_cast %32 : vector<1xf32> to vector<1x1xf32>
    %cst_25 = arith.constant dense<0xFF800000> : vector<2x8xf32>
    %34 = vector.multi_reduction <maximumf>, %22, %cst_25 [1] : vector<2x8x8xf32> to vector<2x8xf32>
    %35 = arith.maximumf %34, %26 : vector<2x8xf32>
    %36 = vector.shape_cast %35 : vector<2x8xf32> to vector<2x1x8xf32>
    %37 = vector.broadcast %36 : vector<2x1x8xf32> to vector<2x8x8xf32>
    %38 = arith.subf %22, %37 : vector<2x8x8xf32>
    %39 = math.exp %38 : vector<2x8x8xf32>
    %cst_26 = arith.constant dense<0.000000e+00> : vector<2x8xf32>
    %40 = vector.multi_reduction <add>, %39, %cst_26 [1] : vector<2x8x8xf32> to vector<2x8xf32>
    %41 = arith.subf %26, %35 : vector<2x8xf32>
    %42 = math.exp %41 : vector<2x8xf32>
    %43 = arith.addf %40, %42 : vector<2x8xf32>
    %44 = tpu.reciprocal %43 {approx = true} : vector<2x8xf32> -> vector<2x8xf32>
    %45 = arith.mulf %43, %44 : vector<2x8xf32>
    %cst_27 = arith.constant 2.000000e+00 : f32
    %46 = vector.broadcast %cst_27 : f32 to vector<2x8xf32>
    %47 = arith.subf %46, %45 : vector<2x8xf32>
    %48 = arith.mulf %44, %47 : vector<2x8xf32>
    %49 = arith.mulf %42, %48 : vector<2x8xf32>
    %cst_28 = arith.constant dense<0xFF800000> : vector<2xf32>
    %50 = vector.multi_reduction <maximumf>, %30, %cst_28 [1] : vector<2x8xf32> to vector<2xf32>
    %51 = vector.shape_cast %50 : vector<2xf32> to vector<2x1xf32>
    %52 = vector.broadcast %33 : vector<1x1xf32> to vector<2x1xf32>
    %53 = arith.maximumf %51, %52 : vector<2x1xf32>
    %54 = vector.broadcast %53 : vector<2x1xf32> to vector<2x8xf32>
    %55 = arith.subf %30, %54 : vector<2x8xf32>
    %56 = math.exp %55 : vector<2x8xf32>
    %cst_29 = arith.constant dense<0.000000e+00> : vector<2xf32>
    %57 = vector.multi_reduction <add>, %56, %cst_29 [1] : vector<2x8xf32> to vector<2xf32>
    %58 = vector.shape_cast %57 : vector<2xf32> to vector<2x1xf32>
    %59 = vector.broadcast %33 : vector<1x1xf32> to vector<2x1xf32>
    %60 = arith.subf %59, %53 : vector<2x1xf32>
    %61 = math.exp %60 : vector<2x1xf32>
    %62 = arith.addf %58, %61 : vector<2x1xf32>
    %63 = tpu.reciprocal %62 {approx = true} : vector<2x1xf32> -> vector<2x1xf32>
    %64 = arith.mulf %62, %63 : vector<2x1xf32>
    %cst_30 = arith.constant 2.000000e+00 : f32
    %65 = vector.broadcast %cst_30 : f32 to vector<2x1xf32>
    %66 = arith.subf %65, %64 : vector<2x1xf32>
    %67 = arith.mulf %63, %66 : vector<2x1xf32>
    %68 = arith.mulf %61, %67 : vector<2x1xf32>
    %69 = vector.shape_cast %49 : vector<2x8xf32> to vector<2x8x1xf32>
    %70 = vector.broadcast %69 : vector<2x8x1xf32> to vector<2x8x32xf32>
    %71 = arith.mulf %70, %18 : vector<2x8x32xf32>
    %cst_31 = arith.constant dense<0.000000e+00> : vector<2x32xf32>
    %72 = vector.multi_reduction <add>, %71, %cst_31 [1] : vector<2x8x32xf32> to vector<2x32xf32>
    %73 = vector.broadcast %68 : vector<2x1xf32> to vector<2x32xf32>
    %74 = vector.broadcast %21 : vector<1x32xf32> to vector<2x32xf32>
    %75 = arith.mulf %73, %74 : vector<2x32xf32>
    %76 = arith.addf %72, %75 : vector<2x32xf32>
    %c0_32 = arith.constant 0 : index
    %c0_33 = arith.constant 0 : index
    %77 = vector.load %arg11[%c0_32, %c0_33] : memref<32x16xf32, #tpu.memory_space<vmem>>, vector<32x16xf32>
    %cst_34 = arith.constant dense<0.000000e+00> : vector<2x16xf32>
    %78 = tpu.matmul %76, %77, %cst_34 {dimension_numbers = #tpu.dot_dimension_numbers<[1], [0], [0], [1], [0, 0, 1, 1], [], []>} : vector<2x32xf32>, vector<32x16xf32>, vector<2x16xf32> -> vector<2x16xf32>
    %c0_35 = arith.constant 0 : index
    %c0_36 = arith.constant 0 : index
    %79 = vector.load %arg12[%c0_35, %c0_36] : memref<1x16xf32, #tpu.memory_space<vmem>>, vector<1x16xf32>
    %80 = vector.broadcast %79 : vector<1x16xf32> to vector<2x16xf32>
    %81 = arith.addf %78, %80 : vector<2x16xf32>
    %c0_37 = arith.constant 0 : index
    %c0_38 = arith.constant 0 : index
    %82 = vector.load %arg13[%c0_37, %c0_38] : memref<2x16xf32, #tpu.memory_space<vmem>>, vector<2x16xf32>
    tpu.vector_store %arg13[%c0_37, %c0_38], %81 {strides = array<i32>} : memref<2x16xf32, #tpu.memory_space<vmem>>, vector<2x16xf32>,
    return
  }
  func.func @transform_0(%arg0: i32) -> (i32, i32) {
    %c0_i32 = arith.constant 0 : i32
    %c0_i32_0 = arith.constant 0 : i32
    return %arg0, %c0_i32 : i32, i32
  }
  func.func @transform_1(%arg0: i32) -> (i32, i32) {
    %c0_i32 = arith.constant 0 : i32
    %c0_i32_0 = arith.constant 0 : i32
    %c0_i32_1 = arith.constant 0 : i32
    return %c0_i32, %c0_i32_0 : i32, i32
  }
  func.func @transform_2(%arg0: i32) -> (i32, i32) {
    %c0_i32 = arith.constant 0 : i32
    %c0_i32_0 = arith.constant 0 : i32
    %c0_i32_1 = arith.constant 0 : i32
    return %c0_i32, %c0_i32_0 : i32, i32
  }
  func.func @transform_3(%arg0: i32) -> (i32, i32) {
    %c0_i32 = arith.constant 0 : i32
    %c0_i32_0 = arith.constant 0 : i32
    %c0_i32_1 = arith.constant 0 : i32
    return %c0_i32, %c0_i32_0 : i32, i32
  }
  func.func @transform_4(%arg0: i32) -> (i32, i32) {
    %c0_i32 = arith.constant 0 : i32
    %c0_i32_0 = arith.constant 0 : i32
    %c0_i32_1 = arith.constant 0 : i32
    return %c0_i32, %c0_i32_0 : i32, i32
  }
  func.func @transform_5(%arg0: i32) -> (i32, i32) {
    %c0_i32 = arith.constant 0 : i32
    %c0_i32_0 = arith.constant 0 : i32
    %c0_i32_1 = arith.constant 0 : i32
    return %c0_i32, %c0_i32_0 : i32, i32
  }
  func.func @transform_6(%arg0: i32) -> (i32, i32) {
    %c0_i32 = arith.constant 0 : i32
    %c0_i32_0 = arith.constant 0 : i32
    %c0_i32_1 = arith.constant 0 : i32
    return %c0_i32, %c0_i32_0 : i32, i32
  }
  func.func @transform_7(%arg0: i32) -> (i32, i32) {
    %c0_i32 = arith.constant 0 : i32
    %c0_i32_0 = arith.constant 0 : i32
    %c0_i32_1 = arith.constant 0 : i32
    return %c0_i32, %c0_i32_0 : i32, i32
  }
  func.func @transform_8(%arg0: i32) -> (i32, i32) {
    %c0_i32 = arith.constant 0 : i32
    %c0_i32_0 = arith.constant 0 : i32
    %c0_i32_1 = arith.constant 0 : i32
    return %c0_i32, %c0_i32_0 : i32, i32
  }
  func.func @transform_9(%arg0: i32) -> (i32, i32) {
    %c0_i32 = arith.constant 0 : i32
    %c0_i32_0 = arith.constant 0 : i32
    %c0_i32_1 = arith.constant 0 : i32
    return %c0_i32, %c0_i32_0 : i32, i32
  }
  func.func @transform_10(%arg0: i32) -> (i32, i32) {
    %c0_i32 = arith.constant 0 : i32
    %c0_i32_0 = arith.constant 0 : i32
    %c0_i32_1 = arith.constant 0 : i32
    return %c0_i32, %c0_i32_0 : i32, i32
  }
  func.func @transform_11(%arg0: i32) -> (i32, i32) {
    %c0_i32 = arith.constant 0 : i32
    %c0_i32_0 = arith.constant 0 : i32
    %c0_i32_1 = arith.constant 0 : i32
    return %c0_i32, %c0_i32_0 : i32, i32
  }
  func.func @transform_12(%arg0: i32) -> (i32, i32) {
    %c0_i32 = arith.constant 0 : i32
    %c0_i32_0 = arith.constant 0 : i32
    return %arg0, %c0_i32 : i32, i32
  }
}

</mosaic_0001>

<llo_original>
// kernel: tpu_custom_call.1
$region0: #{tpu_custom_call.1}
  #allocation0 [shape = 'u32[]', space=smem, size = 0x4, offset = 0x4, fixed_abs, tag = 'smem constant byte address 0x4 - core index']
  #allocation1 [shape = 'u32[144,128]{1,0:T(1,128)}', space=vmem, size = 0x12000, scoped, tag = 'internal scratch']
  %s0 = inlined_call_operand.vmem [shape: f32[16,32], index: 0, kind: input, shape index: {}]
  %s1 = inlined_call_operand.vmem [shape: f32[32,32], index: 1, kind: input, shape index: {}]
  %s2 = inlined_call_operand.vmem [shape: f32[1,32], index: 2, kind: input, shape index: {}]
  %s3 = inlined_call_operand.hbm [shape: f32[32,32], index: 3, kind: input, shape index: {}]
  %s4 = inlined_call_operand.vmem [shape: f32[1,32], index: 4, kind: input, shape index: {}]
  %s5 = inlined_call_operand.hbm [shape: f32[32,32], index: 5, kind: input, shape index: {}]
  %s6 = inlined_call_operand.hbm [shape: f32[1,32], index: 6, kind: input, shape index: {}]
  %s7 = inlined_call_operand.hbm [shape: f32[1,32], index: 7, kind: input, shape index: {}]
  %s8 = inlined_call_operand.hbm [shape: f32[1,32], index: 8, kind: input, shape index: {}]
  %s9 = inlined_call_operand.hbm [shape: f32[1,32], index: 9, kind: input, shape index: {}]
  %s10 = inlined_call_operand.vmem [shape: f32[32,16], index: 10, kind: input, shape index: {}]
  %s11 = inlined_call_operand.vmem [shape: f32[1,16], index: 11, kind: input, shape index: {}]
  %s12 = inlined_call_operand.hbm [shape: f32[2,16], index: 12, kind: output, shape index: {}]
  %s13 = sld [smem:[#allocation0]]
  $region82: #{tpu_custom_call.1} parent=0
    _
  %s15 = ssub.s32 1, %s13
  %s16 = scalar_select 0, %s15, %s13
  $region1: #{tpu_custom_call.1} parent=0
    #allocation2 [shape = 'u8[16384]{0}', space=vmem, size = 0x4000, scoped, tag = 'input window, operand 3, single buffered']
    #allocation3 [shape = 's32[1]{0}', space=sflag, size = 0x4, scoped, tag = 'scoped memory for tpu_custom_call.1']
    #allocation4 [shape = 's32[1]{0}', space=sflag, size = 0x4, scoped, tag = 'scoped memory for tpu_custom_call.1']
    #allocation5 [shape = 'u8[16384]{0}', space=vmem, size = 0x4000, scoped, tag = 'input window, operand 5, single buffered']
    #allocation6 [shape = 's32[1]{0}', space=sflag, size = 0x4, scoped, tag = 'scoped memory for tpu_custom_call.1']
    #allocation7 [shape = 'u8[512]{0}', space=vmem, size = 0x400, scoped, tag = 'input window, operand 6, single buffered']
    #allocation8 [shape = 'u8[512]{0}', space=vmem, size = 0x400, scoped, tag = 'input window, operand 7, single buffered']
    #allocation9 [shape = 's32[1]{0}', space=sflag, size = 0x4, scoped, tag = 'scoped memory for tpu_custom_call.1']
    #allocation10 [shape = 'u8[512]{0}', space=vmem, size = 0x400, scoped, tag = 'input window, operand 8, single buffered']
    #allocation11 [shape = 'u8[512]{0}', space=vmem, size = 0x400, scoped, tag = 'input window, operand 9, single buffered']
    #allocation12 [shape = 's32[1]{0}', space=sflag, size = 0x4, scoped, tag = 'scoped memory for tpu_custom_call.1']
    #allocation13 [shape = 'u8[1024]{0}', space=vmem, size = 0x400, scoped, tag = 'output window, operand 0, single buffered']
    %17 = vsyncpa [#allocation3], 0
    %18 = vsyncpa [#allocation6], 0
    %19 = vsyncpa [#allocation9], 0
    %20 = vsyncpa [#allocation12], 0
    %21 = vsyncpa [#allocation4], 0
    // Predicated region
    $region2: #{tpu_custom_call.1} parent=1 // pred_check
      _
    $region3: #{tpu_custom_call.1} parent=1 // pred_check_branch
      %23 = sbr.rel (0) target = $region5
    $region4: #{tpu_custom_call.1} parent=1 // pred_region
      _
    $region5: #{tpu_custom_call.1} parent=1 // pred_fallthru
      _
    // Predicated region
    $region6: #{tpu_custom_call.1} parent=1 // pred_check
      _
    $region7: #{tpu_custom_call.1} parent=1 // pred_check_branch
      %25 = sbr.rel (0) target = $region9
    $region8: #{tpu_custom_call.1} parent=1 // pred_region
      _
    $region9: #{tpu_custom_call.1} parent=1 // pred_fallthru
      _
    // Predicated region
    $region10: #{tpu_custom_call.1} parent=1 // pred_check
      _
    $region11: #{tpu_custom_call.1} parent=1 // pred_check_branch
      %27 = sbr.rel (0) target = $region13
    $region12: #{tpu_custom_call.1} parent=1 // pred_region
      _
    $region13: #{tpu_custom_call.1} parent=1 // pred_fallthru
      _
    // Predicated region
    $region14: #{tpu_custom_call.1} parent=1 // pred_check
      _
    $region15: #{tpu_custom_call.1} parent=1 // pred_check_branch
      %29 = sbr.rel (0) target = $region17
    $region16: #{tpu_custom_call.1} parent=1 // pred_region
      %s31 = ssub.s32 512, 512
      %32 = vsyncadd [#allocation3], %s31
      %s33 = sshll.u32 [#allocation2], 4
      %s34 = int_to_ptr.vmem [resolvable:$true] %s33
      %39 = dma.hbm_to_vmem [thread:$0]  %s3, 512, %s34, [#allocation3], 128, 128, 8
    $region17: #{tpu_custom_call.1} parent=1 // pred_fallthru
      _
    // Predicated region
    $region18: #{tpu_custom_call.1} parent=1 // pred_check
      _
    $region19: #{tpu_custom_call.1} parent=1 // pred_check_branch
      %41 = sbr.rel (0) target = $region21
    $region20: #{tpu_custom_call.1} parent=1 // pred_region
      _
    $region21: #{tpu_custom_call.1} parent=1 // pred_fallthru
      _
    // Predicated region
    $region22: #{tpu_custom_call.1} parent=1 // pred_check
      _
    $region23: #{tpu_custom_call.1} parent=1 // pred_check_branch
      %43 = sbr.rel (0) target = $region25
    $region24: #{tpu_custom_call.1} parent=1 // pred_region
      %s45 = ssub.s32 512, 512
      %46 = vsyncadd [#allocation6], %s45
      %s47 = sshll.u32 [#allocation5], 4
      %s48 = int_to_ptr.vmem [resolvable:$true] %s47
      %53 = dma.hbm_to_vmem [thread:$0]  %s5, 512, %s48, [#allocation6], 128, 128, 8
    $region25: #{tpu_custom_call.1} parent=1 // pred_fallthru
      _
    // Predicated region
    $region26: #{tpu_custom_call.1} parent=1 // pred_check
      _
    $region27: #{tpu_custom_call.1} parent=1 // pred_check_branch
      %55 = sbr.rel (0) target = $region29
    $region28: #{tpu_custom_call.1} parent=1 // pred_region
      %s57 = ssub.s32 16, 16
      %58 = vsyncadd [#allocation6], %s57
      %s60 = sshll.u32 [#allocation7], 4
      %s61 = int_to_ptr.vmem [resolvable:$true] %s60
      %63 = dma.hbm_to_vmem [thread:$0]  %s6, 16, %s61, [#allocation6]
    $region29: #{tpu_custom_call.1} parent=1 // pred_fallthru
      _
    // Predicated region
    $region30: #{tpu_custom_call.1} parent=1 // pred_check
      _
    $region31: #{tpu_custom_call.1} parent=1 // pred_check_branch
      %65 = sbr.rel (0) target = $region33
    $region32: #{tpu_custom_call.1} parent=1 // pred_region
      %s67 = ssub.s32 16, 16
      %68 = vsyncadd [#allocation9], %s67
      %s70 = sshll.u32 [#allocation8], 4
      %s71 = int_to_ptr.vmem [resolvable:$true] %s70
      %73 = dma.hbm_to_vmem [thread:$0]  %s7, 16, %s71, [#allocation9]
    $region33: #{tpu_custom_call.1} parent=1 // pred_fallthru
      _
    // Predicated region
    $region34: #{tpu_custom_call.1} parent=1 // pred_check
      _
    $region35: #{tpu_custom_call.1} parent=1 // pred_check_branch
      %75 = sbr.rel (0) target = $region37
    $region36: #{tpu_custom_call.1} parent=1 // pred_region
      %s77 = ssub.s32 16, 16
      %78 = vsyncadd [#allocation9], %s77
      %s80 = sshll.u32 [#allocation10], 4
      %s81 = int_to_ptr.vmem [resolvable:$true] %s80
      %83 = dma.hbm_to_vmem [thread:$0]  %s8, 16, %s81, [#allocation9]
    $region37: #{tpu_custom_call.1} parent=1 // pred_fallthru
      _
    // Predicated region
    $region38: #{tpu_custom_call.1} parent=1 // pred_check
      _
    $region39: #{tpu_custom_call.1} parent=1 // pred_check_branch
      %85 = sbr.rel (0) target = $region41
    $region40: #{tpu_custom_call.1} parent=1 // pred_region
      %s87 = ssub.s32 16, 16
      %88 = vsyncadd [#allocation12], %s87
      %s90 = sshll.u32 [#allocation11], 4
      %s91 = int_to_ptr.vmem [resolvable:$true] %s90
      %93 = dma.hbm_to_vmem [thread:$0]  %s9, 16, %s91, [#allocation12]
    $region41: #{tpu_custom_call.1} parent=1 // pred_fallthru
      _
    // Predicated region
    $region42: #{tpu_custom_call.1} parent=1 // pred_check
      _
    $region43: #{tpu_custom_call.1} parent=1 // pred_check_branch
      %95 = sbr.rel (0) target = $region45
    $region44: #{tpu_custom_call.1} parent=1 // pred_region
      _
    $region45: #{tpu_custom_call.1} parent=1 // pred_fallthru
      _
    // Predicated region
    $region46: #{tpu_custom_call.1} parent=1 // pred_check
      _
    $region47: #{tpu_custom_call.1} parent=1 // pred_check_branch
      %97 = sbr.rel (0) target = $region49
    $region48: #{tpu_custom_call.1} parent=1 // pred_region
      _
    $region49: #{tpu_custom_call.1} parent=1 // pred_fallthru
      _
    // Predicated region
    $region50: #{tpu_custom_call.1} parent=1 // pred_check
      _
    $region51: #{tpu_custom_call.1} parent=1 // pred_check_branch
      %99 = sbr.rel (0) target = $region53
    $region52: #{tpu_custom_call.1} parent=1 // pred_region
      %100 = dma.done [#allocation3], 512
    $region53: #{tpu_custom_call.1} parent=1 // pred_fallthru
      _
    // Predicated region
    $region54: #{tpu_custom_call.1} parent=1 // pred_check
      _
    $region55: #{tpu_custom_call.1} parent=1 // pred_check_branch
      %102 = sbr.rel (0) target = $region57
    $region56: #{tpu_custom_call.1} parent=1 // pred_region
      %103 = dma.done [#allocation6], 512
    $region57: #{tpu_custom_call.1} parent=1 // pred_fallthru
      _
    // Predicated region
    $region58: #{tpu_custom_call.1} parent=1 // pred_check
      _
    $region59: #{tpu_custom_call.1} parent=1 // pred_check_branch
      %105 = sbr.rel (0) target = $region61
    $region60: #{tpu_custom_call.1} parent=1 // pred_region
      %106 = dma.done [#allocation6], 16
    $region61: #{tpu_custom_call.1} parent=1 // pred_fallthru
      _
    // Predicated region
    $region62: #{tpu_custom_call.1} parent=1 // pred_check
      _
    $region63: #{tpu_custom_call.1} parent=1 // pred_check_branch
      %108 = sbr.rel (0) target = $region65
    $region64: #{tpu_custom_call.1} parent=1 // pred_region
      %109 = dma.done [#allocation9], 16
    $region65: #{tpu_custom_call.1} parent=1 // pred_fallthru
      _
    // Predicated region
    $region66: #{tpu_custom_call.1} parent=1 // pred_check
      _
    $region67: #{tpu_custom_call.1} parent=1 // pred_check_branch
      %111 = sbr.rel (0) target = $region69
    $region68: #{tpu_custom_call.1} parent=1 // pred_region
      %112 = dma.done [#allocation9], 16
    $region69: #{tpu_custom_call.1} parent=1 // pred_fallthru
      _
    // Predicated region
    $region70: #{tpu_custom_call.1} parent=1 // pred_check
      _
    $region71: #{tpu_custom_call.1} parent=1 // pred_check_branch
      %114 = sbr.rel (0) target = $region73
    $region72: #{tpu_custom_call.1} parent=1 // pred_region
      %115 = dma.done [#allocation12], 16
    $region73: #{tpu_custom_call.1} parent=1 // pred_fallthru
      _
    %v116 = vld [vmem:[%s0] sm:$0xff]
    %v117 = vld [vmem:[%s0 + $0x8] sm:$0xff]
    %v118 = vld [vmem:[%s1] sm:$0xff]
    %v119 = vld [vmem:[%s1 + $0x8] sm:$0xff]
    %v120 = vld [vmem:[%s1 + $0x10] sm:$0xff]
    %v121 = vld [vmem:[%s1 + $0x18] sm:$0xff]
    %v122 = vld [vmem:[%s2] sm:$0x1]
    %v124 = vlaneseq
    %v125 = vshrl.u32 %v124, 7
    %v126 = vsub.s32 0, %v125
    %v127 = vrot.slane %v122, %v126
    %vm129 = vcmask 261120
    %v131 = vsel %vm129, %v116, 0
    %v134 = vsel %vm129, %v117, 0
    %136 = vmatprep.subr.mxu0 0.0
    %137 = vmatpush1.msra.mxu0 0.0
    %138 = vmatprep.subr.mxu0 0.0
    %139 = vmatpush1.msra.mxu0 0.0
    %140 = vmatprep.subr.mxu0 0.0
    %141 = vmatpush1.msra.mxu0 0.0
    %142 = vmatprep.subr.mxu0 0.0
    %143 = vmatpush1.msra.mxu0 0.0
    %144 = vmatprep.subr.mxu0 0.0
    %145 = vmatpush1.msra.mxu0 0.0
    %146 = vmatprep.subr.mxu0 0.0
    %147 = vmatpush1.msra.mxu0 0.0
    %148 = vmatprep.subr.mxu0 0.0
    %149 = vmatpush1.msra.mxu0 0.0
    %150 = vmatprep.subr.mxu0 0.0
    %151 = vmatpush1.msra.mxu0 0.0
    %152 = vmatprep.subr.mxu0 0.0
    %153 = vmatpush1.msra.mxu0 0.0
    %154 = vmatprep.subr.mxu0 0.0
    %155 = vmatpush1.msra.mxu0 0.0
    %156 = vmatprep.subr.mxu0 0.0
    %157 = vmatpush1.msra.mxu0 0.0
    %158 = vmatprep.subr.mxu0 0.0
    %159 = vmatpush1.msra.mxu0 0.0
    %160 = vmatprep.subr.mxu0 0.0
    %161 = vmatpush1.msra.mxu0 %v121
    %162 = vmatprep.subr.mxu0 0.0
    %163 = vmatpush1.msra.mxu0 %v120
    %164 = vmatprep.subr.mxu0 0.0
    %165 = vmatpush1.msra.mxu0 %v119
    %166 = vmatprep.subr.mxu0 0.0
    %167 = vmatpush1.msra.mxu0 %v118
    %168 = vmatprep.subr.mxu0 0.0
    %169 = vmatpush2.msra.mxu0 0.0
    %170 = vmatprep.subr.mxu0 0.0
    %171 = vmatpush2.msra.mxu0 0.0
    %172 = vmatprep.subr.mxu0 0.0
    %173 = vmatpush2.msra.mxu0 0.0
    %174 = vmatprep.subr.mxu0 0.0
    %175 = vmatpush2.msra.mxu0 0.0
    %176 = vmatprep.subr.mxu0 0.0
    %177 = vmatpush2.msra.mxu0 0.0
    %178 = vmatprep.subr.mxu0 0.0
    %179 = vmatpush2.msra.mxu0 0.0
    %180 = vmatprep.subr.mxu0 0.0
    %181 = vmatpush2.msra.mxu0 0.0
    %182 = vmatprep.subr.mxu0 0.0
    %183 = vmatpush2.msra.mxu0 0.0
    %184 = vmatprep.subr.mxu0 0.0
    %185 = vmatpush2.msra.mxu0 0.0
    %186 = vmatprep.subr.mxu0 0.0
    %187 = vmatpush2.msra.mxu0 0.0
    %188 = vmatprep.subr.mxu0 0.0
    %189 = vmatpush2.msra.mxu0 0.0
    %190 = vmatprep.subr.mxu0 0.0
    %191 = vmatpush2.msra.mxu0 0.0
    %192 = vmatprep.subr.mxu0 0.0
    %193 = vmatpush2.msra.mxu0 0.0
    %194 = vmatprep.subr.mxu0 0.0
    %195 = vmatpush2.msra.mxu0 0.0
    %196 = vmatprep.subr.mxu0 0.0
    %197 = vmatpush2.msra.mxu0 0.0
    %198 = vmatprep.subr.mxu0 0.0
    %199 = vmatpush2.msra.mxu0 0.0
    %200 = vmatprep.mubr.f32.mxu0 0.0
    %201 = vmatmul.mubr.f32.gmra.mxu0 %v131
    %v202 = vpop.f32.mrf.mxu0
    %v203 = vadd.f32 %v127, %v202
    %v204 = vpop.f32.mrf.mxu0
    %205 = vmatprep.mubr.f32.mxu0 0.0
    %206 = vmatmul.mubr.f32.gmra.mxu0 %v134
    %v207 = vpop.f32.mrf.mxu0
    %v208 = vadd.f32 %v127, %v207
    %v209 = vpop.f32.mrf.mxu0
    %210 = vdwg.mxu0
    %v211 = vld [vmem:[#allocation2] sm:$0xff]
    %v212 = vld [vmem:[#allocation2 + $0x8] sm:$0xff]
    %v213 = vld [vmem:[#allocation2 + $0x10] sm:$0xff]
    %v214 = vld [vmem:[#allocation2 + $0x18] sm:$0xff]
    %v215 = vld [vmem:[%s4] sm:$0x1]
    %v217 = vlaneseq
    %v218 = vshrl.u32 %v217, 7
    %v219 = vsub.s32 0, %v218
    %v220 = vrot.slane %v215, %v219
    %222 = vmatprep.subr.mxu0 0.0
    %223 = vmatpush1.msra.mxu0 0.0
    %224 = vmatprep.subr.mxu0 0.0
    %225 = vmatpush1.msra.mxu0 0.0
    %226 = vmatprep.subr.mxu0 0.0
    %227 = vmatpush1.msra.mxu0 0.0
    %228 = vmatprep.subr.mxu0 0.0
    %229 = vmatpush1.msra.mxu0 0.0
    %230 = vmatprep.subr.mxu0 0.0
    %231 = vmatpush1.msra.mxu0 0.0
    %232 = vmatprep.subr.mxu0 0.0
    %233 = vmatpush1.msra.mxu0 0.0
    %234 = vmatprep.subr.mxu0 0.0
    %235 = vmatpush1.msra.mxu0 0.0
    %236 = vmatprep.subr.mxu0 0.0
    %237 = vmatpush1.msra.mxu0 0.0
    %238 = vmatprep.subr.mxu0 0.0
    %239 = vmatpush1.msra.mxu0 0.0
    %240 = vmatprep.subr.mxu0 0.0
    %241 = vmatpush1.msra.mxu0 0.0
    %242 = vmatprep.subr.mxu0 0.0
    %243 = vmatpush1.msra.mxu0 0.0
    %244 = vmatprep.subr.mxu0 0.0
    %245 = vmatpush1.msra.mxu0 0.0
    %246 = vmatprep.subr.mxu0 0.0
    %247 = vmatpush1.msra.mxu0 %v214
    %248 = vmatprep.subr.mxu0 0.0
    %249 = vmatpush1.msra.mxu0 %v213
    %250 = vmatprep.subr.mxu0 0.0
    %251 = vmatpush1.msra.mxu0 %v212
    %252 = vmatprep.subr.mxu0 0.0
    %253 = vmatpush1.msra.mxu0 %v211
    %254 = vmatprep.subr.mxu0 0.0
    %255 = vmatpush2.msra.mxu0 0.0
    %256 = vmatprep.subr.mxu0 0.0
    %257 = vmatpush2.msra.mxu0 0.0
    %258 = vmatprep.subr.mxu0 0.0
    %259 = vmatpush2.msra.mxu0 0.0
    %260 = vmatprep.subr.mxu0 0.0
    %261 = vmatpush2.msra.mxu0 0.0
    %262 = vmatprep.subr.mxu0 0.0
    %263 = vmatpush2.msra.mxu0 0.0
    %264 = vmatprep.subr.mxu0 0.0
    %265 = vmatpush2.msra.mxu0 0.0
    %266 = vmatprep.subr.mxu0 0.0
    %267 = vmatpush2.msra.mxu0 0.0
    %268 = vmatprep.subr.mxu0 0.0
    %269 = vmatpush2.msra.mxu0 0.0
    %270 = vmatprep.subr.mxu0 0.0
    %271 = vmatpush2.msra.mxu0 0.0
    %272 = vmatprep.subr.mxu0 0.0
    %273 = vmatpush2.msra.mxu0 0.0
    %274 = vmatprep.subr.mxu0 0.0
    %275 = vmatpush2.msra.mxu0 0.0
    %276 = vmatprep.subr.mxu0 0.0
    %277 = vmatpush2.msra.mxu0 0.0
    %278 = vmatprep.subr.mxu0 0.0
    %279 = vmatpush2.msra.mxu0 0.0
    %280 = vmatprep.subr.mxu0 0.0
    %281 = vmatpush2.msra.mxu0 0.0
    %282 = vmatprep.subr.mxu0 0.0
    %283 = vmatpush2.msra.mxu0 0.0
    %284 = vmatprep.subr.mxu0 0.0
    %285 = vmatpush2.msra.mxu0 0.0
    %286 = vmatprep.mubr.f32.mxu0 0.0
    %287 = vmatmul.mubr.f32.gmra.mxu0 %v131
    %v288 = vpop.f32.mrf.mxu0
    %v289 = vadd.f32 %v220, %v288
    %v290 = vpop.f32.mrf.mxu0
    %291 = vmatprep.mubr.f32.mxu0 0.0
    %292 = vmatmul.mubr.f32.gmra.mxu0 %v134
    %v293 = vpop.f32.mrf.mxu0
    %v294 = vadd.f32 %v220, %v293
    %v295 = vpop.f32.mrf.mxu0
    %296 = vdwg.mxu0
    %v297 = vld [vmem:[#allocation5] sm:$0xff]
    %v298 = vld [vmem:[#allocation5 + $0x8] sm:$0xff]
    %v299 = vld [vmem:[#allocation5 + $0x10] sm:$0xff]
    %v300 = vld [vmem:[#allocation5 + $0x18] sm:$0xff]
    %v301 = vld [vmem:[#allocation7] sm:$0x1]
    %v303 = vlaneseq
    %v304 = vshrl.u32 %v303, 7
    %v305 = vsub.s32 0, %v304
    %v306 = vrot.slane %v301, %v305
    %308 = vmatprep.subr.mxu0 0.0
    %309 = vmatpush1.msra.mxu0 0.0
    %310 = vmatprep.subr.mxu0 0.0
    %311 = vmatpush1.msra.mxu0 0.0
    %312 = vmatprep.subr.mxu0 0.0
    %313 = vmatpush1.msra.mxu0 0.0
    %314 = vmatprep.subr.mxu0 0.0
    %315 = vmatpush1.msra.mxu0 0.0
    %316 = vmatprep.subr.mxu0 0.0
    %317 = vmatpush1.msra.mxu0 0.0
    %318 = vmatprep.subr.mxu0 0.0
    %319 = vmatpush1.msra.mxu0 0.0
    %320 = vmatprep.subr.mxu0 0.0
    %321 = vmatpush1.msra.mxu0 0.0
    %322 = vmatprep.subr.mxu0 0.0
    %323 = vmatpush1.msra.mxu0 0.0
    %324 = vmatprep.subr.mxu0 0.0
    %325 = vmatpush1.msra.mxu0 0.0
    %326 = vmatprep.subr.mxu0 0.0
    %327 = vmatpush1.msra.mxu0 0.0
    %328 = vmatprep.subr.mxu0 0.0
    %329 = vmatpush1.msra.mxu0 0.0
    %330 = vmatprep.subr.mxu0 0.0
    %331 = vmatpush1.msra.mxu0 0.0
    %332 = vmatprep.subr.mxu0 0.0
    %333 = vmatpush1.msra.mxu0 %v300
    %334 = vmatprep.subr.mxu0 0.0
    %335 = vmatpush1.msra.mxu0 %v299
    %336 = vmatprep.subr.mxu0 0.0
    %337 = vmatpush1.msra.mxu0 %v298
    %338 = vmatprep.subr.mxu0 0.0
    %339 = vmatpush1.msra.mxu0 %v297
    %340 = vmatprep.subr.mxu0 0.0
    %341 = vmatpush2.msra.mxu0 0.0
    %342 = vmatprep.subr.mxu0 0.0
    %343 = vmatpush2.msra.mxu0 0.0
    %344 = vmatprep.subr.mxu0 0.0
    %345 = vmatpush2.msra.mxu0 0.0
    %346 = vmatprep.subr.mxu0 0.0
    %347 = vmatpush2.msra.mxu0 0.0
    %348 = vmatprep.subr.mxu0 0.0
    %349 = vmatpush2.msra.mxu0 0.0
    %350 = vmatprep.subr.mxu0 0.0
    %351 = vmatpush2.msra.mxu0 0.0
    %352 = vmatprep.subr.mxu0 0.0
    %353 = vmatpush2.msra.mxu0 0.0
    %354 = vmatprep.subr.mxu0 0.0
    %355 = vmatpush2.msra.mxu0 0.0
    %356 = vmatprep.subr.mxu0 0.0
    %357 = vmatpush2.msra.mxu0 0.0
    %358 = vmatprep.subr.mxu0 0.0
    %359 = vmatpush2.msra.mxu0 0.0
    %360 = vmatprep.subr.mxu0 0.0
    %361 = vmatpush2.msra.mxu0 0.0
    %362 = vmatprep.subr.mxu0 0.0
    %363 = vmatpush2.msra.mxu0 0.0
    %364 = vmatprep.subr.mxu0 0.0
    %365 = vmatpush2.msra.mxu0 0.0
    %366 = vmatprep.subr.mxu0 0.0
    %367 = vmatpush2.msra.mxu0 0.0
    %368 = vmatprep.subr.mxu0 0.0
    %369 = vmatpush2.msra.mxu0 0.0
    %370 = vmatprep.subr.mxu0 0.0
    %371 = vmatpush2.msra.mxu0 0.0
    %372 = vmatprep.mubr.f32.mxu0 0.0
    %373 = vmatmul.mubr.f32.gmra.mxu0 %v131
    %v374 = vpop.f32.mrf.mxu0
    %v375 = vadd.f32 %v306, %v374
    %v376 = vpop.f32.mrf.mxu0
    %377 = vmatprep.mubr.f32.mxu0 0.0
    %378 = vmatmul.mubr.f32.gmra.mxu0 %v134
    %v379 = vpop.f32.mrf.mxu0
    %v380 = vadd.f32 %v306, %v379
    %v381 = vpop.f32.mrf.mxu0
    %382 = vdwg.mxu0
    %v383 = vld [vmem:[#allocation8] sm:$0x1]
    %v384 = vld [vmem:[#allocation10] sm:$0x1]
    %v385 = vld [vmem:[#allocation11] sm:$0x1]
    %v387 = vsel %vm129, %v203, 0
    %v390 = vsel %vm129, %v289, 0
    %392 = vmatprep.subr.mxu0 0.0
    %393 = vmatpush1.xpose.msra.mxu0 0.0
    %394 = vmatprep.subr.mxu0 0.0
    %395 = vmatpush1.xpose.msra.mxu0 0.0
    %396 = vmatprep.subr.mxu0 0.0
    %397 = vmatpush1.xpose.msra.mxu0 0.0
    %398 = vmatprep.subr.mxu0 0.0
    %399 = vmatpush1.xpose.msra.mxu0 0.0
    %400 = vmatprep.subr.mxu0 0.0
    %401 = vmatpush1.xpose.msra.mxu0 0.0
    %402 = vmatprep.subr.mxu0 0.0
    %403 = vmatpush1.xpose.msra.mxu0 0.0
    %404 = vmatprep.subr.mxu0 0.0
    %405 = vmatpush1.xpose.msra.mxu0 0.0
    %406 = vmatprep.subr.mxu0 0.0
    %407 = vmatpush1.xpose.msra.mxu0 0.0
    %408 = vmatprep.subr.mxu0 0.0
    %409 = vmatpush1.xpose.msra.mxu0 0.0
    %410 = vmatprep.subr.mxu0 0.0
    %411 = vmatpush1.xpose.msra.mxu0 0.0
    %412 = vmatprep.subr.mxu0 0.0
    %413 = vmatpush1.xpose.msra.mxu0 0.0
    %414 = vmatprep.subr.mxu0 0.0
    %415 = vmatpush1.xpose.msra.mxu0 0.0
    %416 = vmatprep.subr.mxu0 0.0
    %417 = vmatpush1.xpose.msra.mxu0 0.0
    %418 = vmatprep.subr.mxu0 0.0
    %419 = vmatpush1.xpose.msra.mxu0 0.0
    %420 = vmatprep.subr.mxu0 0.0
    %421 = vmatpush1.xpose.msra.mxu0 0.0
    %422 = vmatprep.subr.mxu0 0.0
    %423 = vmatpush1.xpose.msra.mxu0 %v390
    %424 = vmatprep.subr.mxu0 0.0
    %425 = vmatpush2.xpose.msra.mxu0 0.0
    %426 = vmatprep.subr.mxu0 0.0
    %427 = vmatpush2.xpose.msra.mxu0 0.0
    %428 = vmatprep.subr.mxu0 0.0
    %429 = vmatpush2.xpose.msra.mxu0 0.0
    %430 = vmatprep.subr.mxu0 0.0
    %431 = vmatpush2.xpose.msra.mxu0 0.0
    %432 = vmatprep.subr.mxu0 0.0
    %433 = vmatpush2.xpose.msra.mxu0 0.0
    %434 = vmatprep.subr.mxu0 0.0
    %435 = vmatpush2.xpose.msra.mxu0 0.0
    %436 = vmatprep.subr.mxu0 0.0
    %437 = vmatpush2.xpose.msra.mxu0 0.0
    %438 = vmatprep.subr.mxu0 0.0
    %439 = vmatpush2.xpose.msra.mxu0 0.0
    %440 = vmatprep.subr.mxu0 0.0
    %441 = vmatpush2.xpose.msra.mxu0 0.0
    %442 = vmatprep.subr.mxu0 0.0
    %443 = vmatpush2.xpose.msra.mxu0 0.0
    %444 = vmatprep.subr.mxu0 0.0
    %445 = vmatpush2.xpose.msra.mxu0 0.0
    %446 = vmatprep.subr.mxu0 0.0
    %447 = vmatpush2.xpose.msra.mxu0 0.0
    %448 = vmatprep.subr.mxu0 0.0
    %449 = vmatpush2.xpose.msra.mxu0 0.0
    %450 = vmatprep.subr.mxu0 0.0
    %451 = vmatpush2.xpose.msra.mxu0 0.0
    %452 = vmatprep.subr.mxu0 0.0
    %453 = vmatpush2.xpose.msra.mxu0 0.0
    %454 = vmatprep.subr.mxu0 0.0
    %455 = vmatpush2.xpose.msra.mxu0 0.0
    %456 = vmatprep.mubr.f32.mxu0 0.0
    %457 = vmatmul.mubr.f32.gmra.mxu0 %v387
    %v458 = vpop.f32.mrf.mxu0
    %v459 = vadd.f32 0.0, %v458
    %v460 = vpop.f32.mrf.mxu0
    %461 = vdwg.mxu0
    %v463 = vsel %vm129, %v208, 0
    %v466 = vsel %vm129, %v294, 0
    %468 = vmatprep.subr.mxu0 0.0
    %469 = vmatpush1.xpose.msra.mxu0 0.0
    %470 = vmatprep.subr.mxu0 0.0
    %471 = vmatpush1.xpose.msra.mxu0 0.0
    %472 = vmatprep.subr.mxu0 0.0
    %473 = vmatpush1.xpose.msra.mxu0 0.0
    %474 = vmatprep.subr.mxu0 0.0
    %475 = vmatpush1.xpose.msra.mxu0 0.0
    %476 = vmatprep.subr.mxu0 0.0
    %477 = vmatpush1.xpose.msra.mxu0 0.0
    %478 = vmatprep.subr.mxu0 0.0
    %479 = vmatpush1.xpose.msra.mxu0 0.0
    %480 = vmatprep.subr.mxu0 0.0
    %481 = vmatpush1.xpose.msra.mxu0 0.0
    %482 = vmatprep.subr.mxu0 0.0
    %483 = vmatpush1.xpose.msra.mxu0 0.0
    %484 = vmatprep.subr.mxu0 0.0
    %485 = vmatpush1.xpose.msra.mxu0 0.0
    %486 = vmatprep.subr.mxu0 0.0
    %487 = vmatpush1.xpose.msra.mxu0 0.0
    %488 = vmatprep.subr.mxu0 0.0
    %489 = vmatpush1.xpose.msra.mxu0 0.0
    %490 = vmatprep.subr.mxu0 0.0
    %491 = vmatpush1.xpose.msra.mxu0 0.0
    %492 = vmatprep.subr.mxu0 0.0
    %493 = vmatpush1.xpose.msra.mxu0 0.0
    %494 = vmatprep.subr.mxu0 0.0
    %495 = vmatpush1.xpose.msra.mxu0 0.0
    %496 = vmatprep.subr.mxu0 0.0
    %497 = vmatpush1.xpose.msra.mxu0 0.0
    %498 = vmatprep.subr.mxu0 0.0
    %499 = vmatpush1.xpose.msra.mxu0 %v466
    %500 = vmatprep.subr.mxu0 0.0
    %501 = vmatpush2.xpose.msra.mxu0 0.0
    %502 = vmatprep.subr.mxu0 0.0
    %503 = vmatpush2.xpose.msra.mxu0 0.0
    %504 = vmatprep.subr.mxu0 0.0
    %505 = vmatpush2.xpose.msra.mxu0 0.0
    %506 = vmatprep.subr.mxu0 0.0
    %507 = vmatpush2.xpose.msra.mxu0 0.0
    %508 = vmatprep.subr.mxu0 0.0
    %509 = vmatpush2.xpose.msra.mxu0 0.0
    %510 = vmatprep.subr.mxu0 0.0
    %511 = vmatpush2.xpose.msra.mxu0 0.0
    %512 = vmatprep.subr.mxu0 0.0
    %513 = vmatpush2.xpose.msra.mxu0 0.0
    %514 = vmatprep.subr.mxu0 0.0
    %515 = vmatpush2.xpose.msra.mxu0 0.0
    %516 = vmatprep.subr.mxu0 0.0
    %517 = vmatpush2.xpose.msra.mxu0 0.0
    %518 = vmatprep.subr.mxu0 0.0
    %519 = vmatpush2.xpose.msra.mxu0 0.0
    %520 = vmatprep.subr.mxu0 0.0
    %521 = vmatpush2.xpose.msra.mxu0 0.0
    %522 = vmatprep.subr.mxu0 0.0
    %523 = vmatpush2.xpose.msra.mxu0 0.0
    %524 = vmatprep.subr.mxu0 0.0
    %525 = vmatpush2.xpose.msra.mxu0 0.0
    %526 = vmatprep.subr.mxu0 0.0
    %527 = vmatpush2.xpose.msra.mxu0 0.0
    %528 = vmatprep.subr.mxu0 0.0
    %529 = vmatpush2.xpose.msra.mxu0 0.0
    %530 = vmatprep.subr.mxu0 0.0
    %531 = vmatpush2.xpose.msra.mxu0 0.0
    %532 = vmatprep.mubr.f32.mxu0 0.0
    %533 = vmatmul.mubr.f32.gmra.mxu0 %v463
    %v534 = vpop.f32.mrf.mxu0
    %v535 = vadd.f32 0.0, %v534
    %v536 = vpop.f32.mrf.mxu0
    %537 = vdwg.mxu0
    %v539 = vlaneseq
    %v540 = vshrl.u32 %v539, 7
    %v541 = vsub.s32 0, %v540
    %v542 = vrot.slane %v383, %v541
    %v544 = vmul.f32 %v289, %v542
    %v545 = vmul.f32 %v294, %v542
    %v546 = vsel %vm129, %v544, 0.0
    %547 = vadd.xlane.f32.xlu0 %v546
    %v548 = vpop.xlane.xlu0 %547
    %v549 = vsel %vm129, %v545, 0.0
    %550 = vadd.xlane.f32.xlu0 %v549
    %v551 = vpop.xlane.xlu0 %550
    %v553 = vlaneseq
    %v554 = vshrl.u32 %v553, 7
    %v555 = vsub.s32 0, %v554
    %v556 = vrot.slane %v384, %v555
    %v558 = vmul.f32 %v203, %v556
    %v559 = vmul.f32 %v208, %v556
    %v560 = vsel %vm129, %v558, 0.0
    %561 = vadd.xlane.f32.xlu0 %v560
    %v562 = vpop.xlane.xlu0 %561
    %v563 = vsel %vm129, %v559, 0.0
    %564 = vadd.xlane.f32.xlu0 %v563
    %v565 = vpop.xlane.xlu0 %564
    %v566 = vmul.f32 %v383, %v384
    %vm567 = vcmask 253952
    %v568 = vsel %vm567, %v566, 0.0
    %569 = vadd.xlane.f32.xlu0 %v568
    %v570 = vpop.xlane.xlu0 %569
    %vm571 = vcmask 64512
    %v572 = vsel %vm571, %v459, -inf
    %v573 = vrot.slane %v572, 4
    %v574 = vmax.f32 %v572, %v573
    %v575 = vrot.slane %v574, 2
    %v576 = vmax.f32 %v574, %v575
    %v577 = vrot.slane %v576, 1
    %v578 = vmax.f32 %v576, %v577
    %v579 = vsel %vm571, %v535, -inf
    %v580 = vrot.slane %v579, 4
    %v581 = vmax.f32 %v579, %v580
    %v582 = vrot.slane %v581, 2
    %v583 = vmax.f32 %v581, %v582
    %v584 = vrot.slane %v583, 1
    %v585 = vmax.f32 %v583, %v584
    %v588 = vlaneseq
    %v589 = vand.u32 %v588, 127
    %v590 = vlaneseq
    %v591 = vshrl.u32 %v590, 7
    %v592 = vsub.s32 %v589, %v591
    %v593 = vrot.slane %v548, %v592
    %v594 = vlaneseq
    %v595 = vshrl.u32 %v594, 7
    %v596 = vsub.s32 %v589, %v595
    %v597 = vrot.slane %v551, %v596
    %v600 = vmax.f32 %v578, %v593
    %v601 = vmax.f32 %v585, %v597
    %v602 = vlaneseq
    %v603 = vshrl.u32 %v602, 7
    %v604 = vsub.s32 0, %v603
    %v605 = vrot.slane %v600, %v604
    %v606 = vlaneseq
    %v607 = vshrl.u32 %v606, 7
    %v608 = vsub.s32 0, %v607
    %v609 = vrot.slane %v601, %v608
    %v610 = vsub.f32 %v459, %v605
    %v611 = vsub.f32 %v535, %v609
    %v612 = vmul.f32 %v610, 1.442695
    %v613 = vpow.pop %v612
    %v614 = vmul.f32 %v611, 1.442695
    %v615 = vpow.pop %v614
    %v616 = vsel %vm571, %v613, 0.0
    %v617 = vrot.slane %v616, 4
    %v618 = vadd.f32 %v616, %v617
    %v619 = vrot.slane %v618, 2
    %v620 = vadd.f32 %v618, %v619
    %v621 = vrot.slane %v620, 1
    %v622 = vadd.f32 %v620, %v621
    %v623 = vsel %vm571, %v615, 0.0
    %v624 = vrot.slane %v623, 4
    %v625 = vadd.f32 %v623, %v624
    %v626 = vrot.slane %v625, 2
    %v627 = vadd.f32 %v625, %v626
    %v628 = vrot.slane %v627, 1
    %v629 = vadd.f32 %v627, %v628
    %v632 = vlaneseq
    %v633 = vshrl.u32 %v632, 7
    %v634 = vsub.s32 0, %v633
    %v635 = vrot.slane %v600, %v634
    %637 = vbcast.lane.b32.xlu0 %v635, 256
    %v638 = vpop.permute.xlu0 %637
    %v639 = vlaneseq
    %v640 = vshrl.u32 %v639, 7
    %v641 = vsub.s32 0, %v640
    %v642 = vrot.slane %v601, %v641
    %644 = vbcast.lane.b32.xlu0 %v642, 256
    %v645 = vpop.permute.xlu0 %644
    %v648 = vsub.f32 %v548, %v638
    %v649 = vsub.f32 %v551, %v645
    %v650 = vmul.f32 %v648, 1.442695
    %v651 = vpow.pop %v650
    %v652 = vmul.f32 %v649, 1.442695
    %v653 = vpow.pop %v652
    %656 = vset.pattern.permute.xlu0 0
    %657 = vperm.xlu0 %656, %v651
    %v658 = vpop.permute.xlu0 %657
    %659 = vset.pattern.permute.xlu0 0
    %660 = vperm.xlu0 %659, %v653
    %v661 = vpop.permute.xlu0 %660
    %v662 = vlaneseq
    %v663 = vshrl.u32 %v662, 7
    %v664 = vsub.s32 %v589, %v663
    %v665 = vrot.slane %v658, %v664
    %v666 = vlaneseq
    %v667 = vshrl.u32 %v666, 7
    %v668 = vsub.s32 %v589, %v667
    %v669 = vrot.slane %v661, %v668
    %v672 = vadd.f32 %v622, %v665
    %v673 = vadd.f32 %v629, %v669
    %v674 = vrcp.pop %v672
    %v675 = vrcp.pop %v673
    %v676 = vmul.f32 %v672, %v674
    %v677 = vmul.f32 %v673, %v675
    %v678 = vsub.f32 2.0, %v676
    %v679 = vsub.f32 2.0, %v677
    %v680 = vmul.f32 %v674, %v678
    %v681 = vmul.f32 %v675, %v679
    %v684 = vlaneseq
    %v685 = vshrl.u32 %v684, 7
    %v686 = vsub.s32 0, %v685
    %v687 = vrot.slane %v680, %v686
    %689 = vbcast.lane.b32.xlu0 %v687, 256
    %v690 = vpop.permute.xlu0 %689
    %v691 = vlaneseq
    %v692 = vshrl.u32 %v691, 7
    %v693 = vsub.s32 0, %v692
    %v694 = vrot.slane %v681, %v693
    %696 = vbcast.lane.b32.xlu0 %v694, 256
    %v697 = vpop.permute.xlu0 %696
    %v700 = vmul.f32 %v651, %v690
    %v701 = vmul.f32 %v653, %v697
    %v704 = vlaneseq
    %v705 = vshrl.u32 %v704, 7
    %v706 = vsub.s32 %v589, %v705
    %v707 = vrot.slane %v562, %v706
    %v708 = vlaneseq
    %v709 = vshrl.u32 %v708, 7
    %v710 = vsub.s32 %v589, %v709
    %v711 = vrot.slane %v565, %v710
    %vm712 = vcmask 1041409
    %v713 = vsel %vm712, %v711, %v707
    %vm715 = vcmask 58368
    %v716 = vsel %vm715, %v713, -inf
    %717 = vmax.xlane.f32.xlu0 %v716
    %v718 = vpop.xlane.xlu0 %717
    %v719 = vlaneseq
    %v720 = vshrl.u32 %v719, 7
    %v721 = vsub.s32 0, %v720
    %v722 = vrot.slane %v570, %v721
    %v723 = vmax.f32 %v718, %v722
    %v725 = vlaneseq
    %v726 = vshrl.u32 %v725, 7
    %v727 = vsub.s32 0, %v726
    %v728 = vrot.slane %v723, %v727
    %v729 = vlaneseq
    %v730 = vshrl.u32 %v729, 7
    %v731 = vsub.s32 1, %v730
    %v732 = vrot.slane %v723, %v731
    %v735 = vsub.f32 %v562, %v728
    %v736 = vsub.f32 %v565, %v732
    %v737 = vmul.f32 %v735, 1.442695
    %v738 = vpow.pop %v737
    %v739 = vmul.f32 %v736, 1.442695
    %v740 = vpow.pop %v739
    %743 = vset.pattern.permute.xlu0 0
    %744 = vperm.xlu0 %743, %v738
    %v745 = vpop.permute.xlu0 %744
    %746 = vset.pattern.permute.xlu0 0
    %747 = vperm.xlu0 %746, %v740
    %v748 = vpop.permute.xlu0 %747
    %v749 = vlaneseq
    %v750 = vshrl.u32 %v749, 7
    %v751 = vsub.s32 %v589, %v750
    %v752 = vrot.slane %v745, %v751
    %v753 = vlaneseq
    %v754 = vshrl.u32 %v753, 7
    %v755 = vsub.s32 %v589, %v754
    %v756 = vrot.slane %v748, %v755
    %v757 = vsel %vm712, %v756, %v752
    %v759 = vsel %vm715, %v757, 0.0
    %760 = vadd.xlane.f32.xlu0 %v759
    %v761 = vpop.xlane.xlu0 %760
    %v762 = vsub.f32 %v722, %v723
    %v763 = vmul.f32 %v762, 1.442695
    %v764 = vpow.pop %v763
    %v765 = vadd.f32 %v761, %v764
    %v766 = vrcp.pop %v765
    %v767 = vmul.f32 %v765, %v766
    %v768 = vsub.f32 2.0, %v767
    %v769 = vmul.f32 %v766, %v768
    %v770 = vmul.f32 %v764, %v769
    %772 = vset.pattern.permute.xlu0 0
    %773 = vperm.xlu0 %772, %v700
    %v774 = vpop.permute.xlu0 %773
    %777 = vset.pattern.permute.xlu0 0
    %778 = vperm.xlu0 %777, %v701
    %v779 = vpop.permute.xlu0 %778
    %v781 = vmul.f32 %v774, %v375
    %v782 = vmul.f32 %v779, %v380
    %v783 = vsel %vm129, %v781, 0.0
    %v784 = vrot.slane %v783, 4
    %v785 = vadd.f32 %v783, %v784
    %v786 = vrot.slane %v785, 2
    %v787 = vadd.f32 %v785, %v786
    %v788 = vrot.slane %v787, 1
    %v789 = vadd.f32 %v787, %v788
    %v790 = vsel %vm129, %v782, 0.0
    %v791 = vrot.slane %v790, 4
    %v792 = vadd.f32 %v790, %v791
    %v793 = vrot.slane %v792, 2
    %v794 = vadd.f32 %v792, %v793
    %v795 = vrot.slane %v794, 1
    %v796 = vadd.f32 %v794, %v795
    %v798 = vlaneseq
    %v799 = vshrl.u32 %v798, 7
    %v800 = vsub.s32 0, %v799
    %v801 = vrot.slane %v385, %v800
    %v803 = vmul.f32 %v770, %v801
    %v805 = vrot.slane %v803, 1
    %v808 = vadd.f32 %v789, %v803
    %v809 = vadd.f32 %v796, %v805
    %v810 = vld [vmem:[%s10] sm:$0xff]
    %v811 = vld [vmem:[%s10 + $0x8] sm:$0xff]
    %v812 = vld [vmem:[%s10 + $0x10] sm:$0xff]
    %v813 = vld [vmem:[%s10 + $0x18] sm:$0xff]
    %v814 = vld [vmem:[%s11] sm:$0x1]
    %v816 = vlaneseq
    %v817 = vshrl.u32 %v816, 7
    %v818 = vsub.s32 0, %v817
    %v819 = vrot.slane %v814, %v818
    %v823 = vrot.slane %v809, 7
    %v824 = vsel %vm712, %v823, %v808
    %v825 = vsel %vm129, %v824, 0
    %827 = vmatprep.subr.mxu0 0.0
    %828 = vmatpush1.msra.mxu0 0.0
    %829 = vmatprep.subr.mxu0 0.0
    %830 = vmatpush1.msra.mxu0 0.0
    %831 = vmatprep.subr.mxu0 0.0
    %832 = vmatpush1.msra.mxu0 0.0
    %833 = vmatprep.subr.mxu0 0.0
    %834 = vmatpush1.msra.mxu0 0.0
    %835 = vmatprep.subr.mxu0 0.0
    %836 = vmatpush1.msra.mxu0 0.0
    %837 = vmatprep.subr.mxu0 0.0
    %838 = vmatpush1.msra.mxu0 0.0
    %839 = vmatprep.subr.mxu0 0.0
    %840 = vmatpush1.msra.mxu0 0.0
    %841 = vmatprep.subr.mxu0 0.0
    %842 = vmatpush1.msra.mxu0 0.0
    %843 = vmatprep.subr.mxu0 0.0
    %844 = vmatpush1.msra.mxu0 0.0
    %845 = vmatprep.subr.mxu0 0.0
    %846 = vmatpush1.msra.mxu0 0.0
    %847 = vmatprep.subr.mxu0 0.0
    %848 = vmatpush1.msra.mxu0 0.0
    %849 = vmatprep.subr.mxu0 0.0
    %850 = vmatpush1.msra.mxu0 0.0
    %851 = vmatprep.subr.mxu0 0.0
    %852 = vmatpush1.msra.mxu0 %v813
    %853 = vmatprep.subr.mxu0 0.0
    %854 = vmatpush1.msra.mxu0 %v812
    %855 = vmatprep.subr.mxu0 0.0
    %856 = vmatpush1.msra.mxu0 %v811
    %857 = vmatprep.subr.mxu0 0.0
    %858 = vmatpush1.msra.mxu0 %v810
    %859 = vmatprep.subr.mxu0 0.0
    %860 = vmatpush2.msra.mxu0 0.0
    %861 = vmatprep.subr.mxu0 0.0
    %862 = vmatpush2.msra.mxu0 0.0
    %863 = vmatprep.subr.mxu0 0.0
    %864 = vmatpush2.msra.mxu0 0.0
    %865 = vmatprep.subr.mxu0 0.0
    %866 = vmatpush2.msra.mxu0 0.0
    %867 = vmatprep.subr.mxu0 0.0
    %868 = vmatpush2.msra.mxu0 0.0
    %869 = vmatprep.subr.mxu0 0.0
    %870 = vmatpush2.msra.mxu0 0.0
    %871 = vmatprep.subr.mxu0 0.0
    %872 = vmatpush2.msra.mxu0 0.0
    %873 = vmatprep.subr.mxu0 0.0
    %874 = vmatpush2.msra.mxu0 0.0
    %875 = vmatprep.subr.mxu0 0.0
    %876 = vmatpush2.msra.mxu0 0.0
    %877 = vmatprep.subr.mxu0 0.0
    %878 = vmatpush2.msra.mxu0 0.0
    %879 = vmatprep.subr.mxu0 0.0
    %880 = vmatpush2.msra.mxu0 0.0
    %881 = vmatprep.subr.mxu0 0.0
    %882 = vmatpush2.msra.mxu0 0.0
    %883 = vmatprep.subr.mxu0 0.0
    %884 = vmatpush2.msra.mxu0 0.0
    %885 = vmatprep.subr.mxu0 0.0
    %886 = vmatpush2.msra.mxu0 0.0
    %887 = vmatprep.subr.mxu0 0.0
    %888 = vmatpush2.msra.mxu0 0.0
    %889 = vmatprep.subr.mxu0 0.0
    %890 = vmatpush2.msra.mxu0 0.0
    %891 = vmatprep.mubr.f32.mxu0 0.0
    %892 = vmatmul.mubr.f32.gmra.mxu0 %v825
    %v893 = vpop.f32.mrf.mxu0
    %v894 = vadd.f32 %v819, %v893
    %v895 = vpop.f32.mrf.mxu0
    %896 = vdwg.mxu0
    %vm897 = vcmask 123904
    %898 = vst.msk [vmem:[#allocation13] sm:$0x3] %vm897, %v894
    // Predicated region
    $region74: #{tpu_custom_call.1} parent=1 // pred_check
      _
    $region75: #{tpu_custom_call.1} parent=1 // pred_check_branch
      %900 = sbr.rel (0) target = $region77
    $region76: #{tpu_custom_call.1} parent=1 // pred_region
      %s902 = ssub.s32 32, 32
      %903 = vsyncadd [#allocation4], %s902
      %s905 = sshll.u32 [#allocation13], 4
      %s906 = int_to_ptr.vmem [resolvable:$true] %s905
      %908 = dma.vmem_to_hbm [thread:$0]  %s906, 32, %s12, [#allocation4]
    $region77: #{tpu_custom_call.1} parent=1 // pred_fallthru
      _
    // Predicated region
    $region78: #{tpu_custom_call.1} parent=1 // pred_check
      _
    $region79: #{tpu_custom_call.1} parent=1 // pred_check_branch
      %910 = sbr.rel (0) target = $region81
    $region80: #{tpu_custom_call.1} parent=1 // pred_region
      %911 = dma.done [#allocation4], 32
    $region81: #{tpu_custom_call.1} parent=1 // pred_fallthru
      _
    %912 = vsyncpa [#allocation3], 1
    %913 = vsyncpa [#allocation6], 1
    %914 = vsyncpa [#allocation9], 1
    %915 = vsyncpa [#allocation12], 1
    %916 = vsyncpa [#allocation4], 1

</llo_original>
